<compile_context>
chip_gen: v7x
topology: tpu7x:2x2x1
jax: 0.10.0
libtpu: 0.0.40
codegen_flags: <defaults>
</compile_context>

<pallas_src>
import jax
import jax.numpy as jnp
from jax.experimental import pallas as pl
from jax.experimental.pallas import tpu as pltpu

_CHUNK = 2048          # lanes per in-kernel dot/store chunk (keeps live result tiny)
_LANE_CAP_F32 = 32768  # lane-tile cap for 4-byte dtypes; scaled up for narrower dtypes


def _round_up(x, m):
    return ((x + m - 1) // m) * m


def _l_dspec_kernel(p_ref, x_ref, o_ref):
    # p_ref: (C_out, C_in)  resident weight block (same block every grid step)
    # x_ref: (C_in, TN)     one lane tile of the flattened spatial axis
    # o_ref: (C_out, TN)    lane-dense output tile
    p = p_ref[...]
    tn = x_ref.shape[1]
    n_full, rem = divmod(tn, _CHUNK)
    # Chunk the dot: each (C_out, _CHUNK) f32 result is stored immediately, so
    # the live value stays at a few vregs even for very large lane tiles
    # (avoids Mosaic spills that would eat the DMA-amortization win).
    # Trip count is static and small (<= cap/_CHUNK = 16 for f32).
    for c in range(n_full):
        start = c * _CHUNK
        o_ref[:, pl.ds(start, _CHUNK)] = jnp.dot(
            p, x_ref[:, pl.ds(start, _CHUNK)],
            preferred_element_type=jnp.float32,
        ).astype(o_ref.dtype)
    if rem:
        start = n_full * _CHUNK
        o_ref[:, pl.ds(start, rem)] = jnp.dot(
            p, x_ref[:, pl.ds(start, rem)],
            preferred_element_type=jnp.float32,
        ).astype(o_ref.dtype)


def _choose_tn(hw, itemsize):
    """Pick a big, lane-dense tile.

    - hw <= _CHUNK  -> a single block equal to the full lane extent (legal even
                       when not a multiple of 128; one grid step, overhead paid
                       once).
    - larger hw     -> _CHUNK-multiple tiles sized for a grid of >= 2 (so the
                       'parallel' axis can shard across both v7x TensorCores),
                       capped so per-step DMA stays a few MiB double-buffered.
      The cap scales with 4/itemsize so bf16/int8 inputs keep the same
      per-step HBM byte count (fixed ~0.35 us step overhead stays amortized).
    """
    if hw <= _CHUNK:
        return hw
    cap = (_LANE_CAP_F32 * 4) // itemsize
    tn = _round_up(pl.cdiv(hw, 2), _CHUNK)
    return min(tn, cap)


def l_dspec_forward(x_nchw, P):
    """x_nchw: (1, C_in, H, W);  P: (C_out, C_in).  Returns (C_out, H, W)."""
    N, C_in, H, W = x_nchw.shape
    assert N == 1, "L_Dspec.forward implicitly assumes batch dim == 1"
    C_out = P.shape[0]
    HW = H * W

    x2d = x_nchw.reshape(C_in, HW)  # glue reshape stays in plain JAX (free)
    itemsize = jnp.dtype(x2d.dtype).itemsize
    tn = _choose_tn(HW, itemsize)

    cost = pl.CostEstimate(
        flops=2 * C_out * C_in * HW,
        transcendentals=0,
        bytes_accessed=itemsize * (C_in + C_out) * HW
        + jnp.dtype(P.dtype).itemsize * C_out * C_in,
    )

    out2d = pl.pallas_call(
        _l_dspec_kernel,
        out_shape=jax.ShapeDtypeStruct((C_out, HW), x2d.dtype),
        grid_spec=pltpu.PrefetchScalarGridSpec(
            num_scalar_prefetch=0,
            grid=(pl.cdiv(HW, tn),),
            in_specs=[
                # P: block == full array dims, constant index_map -> VMEM-resident.
                pl.BlockSpec((C_out, C_in), lambda j: (0, 0)),
                # X: one big lane tile per step (C_in equals full sublane extent).
                pl.BlockSpec((C_in, tn), lambda j: (0, j)),
            ],
            # Lane-dense output tile; Pallas masks the writeback of the final
            # partial tile automatically (no host-side pad/slice needed).
            out_specs=pl.BlockSpec((C_out, tn), lambda j: (0, j)),
        ),
        compiler_params=pltpu.CompilerParams(
            dimension_semantics=("parallel",),
        ),
        cost_estimate=cost,
    )(P, x2d)

    return out2d.reshape(C_out, H, W)


def _reference(x_nchw, P):
    _, C_in, H, W = x_nchw.shape
    return (P @ x_nchw.reshape(C_in, H * W)).reshape(P.shape[0], H, W)


if __name__ == "__main__":
    key = jax.random.PRNGKey(0)
    k_p, k1, k2, k3, k4, k5 = jax.random.split(key, 6)

    C_in, C_out = 4, 8
    P = jax.random.normal(k_p, (C_out, C_in), dtype=jnp.float32) * 0.1

    # Case 1: small spatial (HW=256) -> single-block grid.
    x1 = jax.random.normal(k1, (1, C_in, 16, 16), dtype=jnp.float32)
    o1 = jax.block_until_ready(l_dspec_forward(x1, P))
    assert o1.shape == (C_out, 16, 16)
    assert jnp.allclose(o1, _reference(x1, P), atol=1e-5, rtol=1e-5)

    # Case 2: HW=4096 -> tn=2048, grid of 2 (both tiles full, lane-dense).
    x2 = jax.random.normal(k2, (1, C_in, 64, 64), dtype=jnp.float32)
    o2 = jax.block_until_ready(l_dspec_forward(x2, P))
    assert o2.shape == (C_out, 64, 64)
    assert jnp.allclose(o2, _reference(x2, P), atol=1e-5, rtol=1e-5)

    # Case 3: odd small spatial (HW=255) -> single block equal to full extent.
    x3 = jax.random.normal(k3, (1, C_in, 17, 15), dtype=jnp.float32)
    o3 = jax.block_until_ready(l_dspec_forward(x3, P))
    assert o3.shape == (C_out, 17, 15)
    assert jnp.allclose(o3, _reference(x3, P), atol=1e-5, rtol=1e-5)

    # Case 4: HW=16384 -> tn=8192, grid of 2, chunked in-kernel dot (4 chunks).
    x4 = jax.random.normal(k4, (1, C_in, 128, 128), dtype=jnp.float32)
    o4 = jax.block_until_ready(l_dspec_forward(x4, P))
    assert o4.shape == (C_out, 128, 128)
    assert jnp.allclose(o4, _reference(x4, P), atol=1e-5, rtol=1e-5)

    # Case 5: HW=9000 -> tn=6144, grid of 2, ragged final block (masked store),
    # exercises the no-pad / no-slice partial-block path.
    x5 = jax.random.normal(k5, (1, C_in, 100, 90), dtype=jnp.float32)
    o5 = jax.block_until_ready(l_dspec_forward(x5, P))
    assert o5.shape == (C_out, 100, 90)
    assert jnp.allclose(o5, _reference(x5, P), atol=1e-5, rtol=1e-5)

    print("KERNEL_OK")
</pallas_src>

<mosaic_0001>
module attributes {stable_mosaic.version = 11 : i64} {
  func.func @_l_dspec_kernel(%arg0: i32, %arg1: memref<8x4xf32, #tpu.memory_space<vmem>>, %arg2: memref<4x256xf32, #tpu.memory_space<vmem>>, %arg3: memref<8x256xf32, #tpu.memory_space<vmem>>) attributes {dimension_semantics = [#tpu.dimension_semantics<parallel>], iteration_bounds = array<i64: 1>, scalar_prefetch = 0 : i64, scratch_operands = 0 : i64, tpu.core_type = #tpu.core_type<tc>, window_params = [{pipeline_mode = #tpu.pipeline_mode<synchronous>, transform_indices = @transform_0, window_bounds = array<i64: 8, 4>}, {transform_indices = @transform_1, window_bounds = array<i64: 4, 256>}, {transform_indices = @transform_2, window_bounds = array<i64: 8, 256>}]} {
    %c0 = arith.constant 0 : index
    %c0_0 = arith.constant 0 : index
    %0 = vector.load %arg1[%c0, %c0_0] : memref<8x4xf32, #tpu.memory_space<vmem>>, vector<8x4xf32>
    %c0_1 = arith.constant 0 : index
    %c0_2 = arith.constant 0 : index
    %1 = vector.load %arg2[%c0_1, %c0_2] : memref<4x256xf32, #tpu.memory_space<vmem>>, vector<4x256xf32>
    %cst = arith.constant dense<0.000000e+00> : vector<8x256xf32>
    %2 = tpu.matmul %0, %1, %cst {dimension_numbers = #tpu.dot_dimension_numbers<[1], [0], [0], [1], [0, 0, 1, 1], [], []>} : vector<8x4xf32>, vector<4x256xf32>, vector<8x256xf32> -> vector<8x256xf32>
    %c0_3 = arith.constant 0 : index
    %c0_4 = arith.constant 0 : index
    %3 = vector.load %arg3[%c0_3, %c0_4] : memref<8x256xf32, #tpu.memory_space<vmem>>, vector<8x256xf32>
    tpu.vector_store %arg3[%c0_3, %c0_4], %2 {strides = array<i32>} : memref<8x256xf32, #tpu.memory_space<vmem>>, vector<8x256xf32>,
    return
  }
  func.func @transform_0(%arg0: i32) -> (i32, i32) {
    %c0_i32 = arith.constant 0 : i32
    %c0_i32_0 = arith.constant 0 : i32
    %c0_i32_1 = arith.constant 0 : i32
    return %c0_i32, %c0_i32_0 : i32, i32
  }
  func.func @transform_1(%arg0: i32) -> (i32, i32) {
    %c0_i32 = arith.constant 0 : i32
    %c0_i32_0 = arith.constant 0 : i32
    return %c0_i32, %arg0 : i32, i32
  }
  func.func @transform_2(%arg0: i32) -> (i32, i32) {
    %c0_i32 = arith.constant 0 : i32
    %c0_i32_0 = arith.constant 0 : i32
    return %c0_i32, %arg0 : i32, i32
  }
}

</mosaic_0001>

<llo_original>
// kernel: tpu_custom_call.1
$region0: #{tpu_custom_call.1}
  #allocation0 [shape = 'u32[]', space=smem, size = 0x4, offset = 0x4, fixed_abs, tag = 'smem constant byte address 0x4 - core index']
  #allocation1 [shape = 'u32[144,128]{1,0:T(1,128)}', space=vmem, size = 0x12000, scoped, tag = 'internal scratch']
  %s0 = inlined_call_operand.vmem [shape: f32[8,4], index: 0, kind: input, shape index: {}]
  %s1 = inlined_call_operand.vmem [shape: f32[4,256], index: 1, kind: input, shape index: {}]
  %s2 = inlined_call_operand.hbm [shape: f32[8,256], index: 2, kind: output, shape index: {}]
  %s3 = sld [smem:[#allocation0]]
  $region18: #{tpu_custom_call.1} parent=0
    _
  %s5 = ssub.s32 1, %s3
  %s6 = scalar_select 0, %s5, %s3
  $region1: #{tpu_custom_call.1} parent=0
    #allocation2 [shape = 'u8[8192]{0}', space=vmem, size = 0x2000, scoped, tag = 'output window, operand 0, single buffered']
    #allocation3 [shape = 's32[1]{0}', space=sflag, size = 0x4, scoped, tag = 'scoped memory for tpu_custom_call.1']
    %7 = vsyncpa [#allocation3], 0
    // Predicated region
    $region2: #{tpu_custom_call.1} parent=1 // pred_check
      _
    $region3: #{tpu_custom_call.1} parent=1 // pred_check_branch
      %9 = sbr.rel (0) target = $region5
    $region4: #{tpu_custom_call.1} parent=1 // pred_region
      _
    $region5: #{tpu_custom_call.1} parent=1 // pred_fallthru
      _
    // Predicated region
    $region6: #{tpu_custom_call.1} parent=1 // pred_check
      _
    $region7: #{tpu_custom_call.1} parent=1 // pred_check_branch
      %11 = sbr.rel (0) target = $region9
    $region8: #{tpu_custom_call.1} parent=1 // pred_region
      _
    $region9: #{tpu_custom_call.1} parent=1 // pred_fallthru
      _
    %v12 = vld [vmem:[%s0] sm:$0xff]
    %v13 = vld [vmem:[%s1] sm:$0xff]
    %v15 = vcombine.high %v13, %v13
    %vm16 = vcmask 31744
    %v18 = vsel %vm16, %v12, 0
    %vm20 = vcmask 1043456
    %v21 = vsel %vm20, %v13, 0
    %v23 = vsel %vm20, %v15, 0
    %25 = vmatprep.subr.mxu0 %v23
    %26 = vmatpush1.msra.mxu0 %v21
    %27 = vmatprep.subr.mxu0 0.0
    %28 = vmatpush1.msra.mxu0 0.0
    %29 = vmatprep.subr.mxu0 0.0
    %30 = vmatpush1.msra.mxu0 0.0
    %31 = vmatprep.subr.mxu0 0.0
    %32 = vmatpush1.msra.mxu0 0.0
    %33 = vmatprep.subr.mxu0 0.0
    %34 = vmatpush1.msra.mxu0 0.0
    %35 = vmatprep.subr.mxu0 0.0
    %36 = vmatpush1.msra.mxu0 0.0
    %37 = vmatprep.subr.mxu0 0.0
    %38 = vmatpush1.msra.mxu0 0.0
    %39 = vmatprep.subr.mxu0 0.0
    %40 = vmatpush1.msra.mxu0 0.0
    %41 = vmatprep.subr.mxu0 0.0
    %42 = vmatpush1.msra.mxu0 0.0
    %43 = vmatprep.subr.mxu0 0.0
    %44 = vmatpush1.msra.mxu0 0.0
    %45 = vmatprep.subr.mxu0 0.0
    %46 = vmatpush1.msra.mxu0 0.0
    %47 = vmatprep.subr.mxu0 0.0
    %48 = vmatpush1.msra.mxu0 0.0
    %49 = vmatprep.subr.mxu0 0.0
    %50 = vmatpush1.msra.mxu0 0.0
    %51 = vmatprep.subr.mxu0 0.0
    %52 = vmatpush1.msra.mxu0 0.0
    %53 = vmatprep.subr.mxu0 0.0
    %54 = vmatpush1.msra.mxu0 0.0
    %55 = vmatprep.subr.mxu0 0.0
    %56 = vmatpush1.msra.mxu0 0.0
    %57 = vmatprep.subr.mxu0 0.0
    %58 = vmatpush1.msra.mxu0 0.0
    %59 = vmatprep.subr.mxu0 0.0
    %60 = vmatpush1.msra.mxu0 0.0
    %61 = vmatprep.subr.mxu0 0.0
    %62 = vmatpush1.msra.mxu0 0.0
    %63 = vmatprep.subr.mxu0 0.0
    %64 = vmatpush1.msra.mxu0 0.0
    %65 = vmatprep.subr.mxu0 0.0
    %66 = vmatpush1.msra.mxu0 0.0
    %67 = vmatprep.subr.mxu0 0.0
    %68 = vmatpush1.msra.mxu0 0.0
    %69 = vmatprep.subr.mxu0 0.0
    %70 = vmatpush1.msra.mxu0 0.0
    %71 = vmatprep.subr.mxu0 0.0
    %72 = vmatpush1.msra.mxu0 0.0
    %73 = vmatprep.subr.mxu0 0.0
    %74 = vmatpush1.msra.mxu0 0.0
    %75 = vmatprep.subr.mxu0 0.0
    %76 = vmatpush1.msra.mxu0 0.0
    %77 = vmatprep.subr.mxu0 0.0
    %78 = vmatpush1.msra.mxu0 0.0
    %79 = vmatprep.subr.mxu0 0.0
    %80 = vmatpush1.msra.mxu0 0.0
    %81 = vmatprep.subr.mxu0 0.0
    %82 = vmatpush1.msra.mxu0 0.0
    %83 = vmatprep.subr.mxu0 0.0
    %84 = vmatpush1.msra.mxu0 0.0
    %85 = vmatprep.subr.mxu0 0.0
    %86 = vmatpush1.msra.mxu0 0.0
    %87 = vmatprep.subr.mxu0 0.0
    %88 = vmatpush1.msra.mxu0 0.0
    %89 = vmatprep.mubr.f32.mxu0 0.0
    %90 = vmatmul.mubr.f32.gmra.mrb[0].mxu0 %v18
    %v91 = vpop.f32.mrb[0].mxu0
    %v92 = vadd.f32 0.0, %v91
    %v93 = vpop.f32.mrb[0].mxu0
    %v94 = vadd.f32 0.0, %v93
    %95 = vdwg.mxu0
    %96 = vst [vmem:[#allocation2] sm:$0xff] %v92
    %97 = vst [vmem:[#allocation2 + $0x8] sm:$0xff] %v94
    // Predicated region
    $region10: #{tpu_custom_call.1} parent=1 // pred_check
      _
    $region11: #{tpu_custom_call.1} parent=1 // pred_check_branch
      %99 = sbr.rel (0) target = $region13
    $region12: #{tpu_custom_call.1} parent=1 // pred_region
      %s101 = ssub.s32 256, 256
      %102 = vsyncadd [#allocation3], %s101
      %s104 = sshll.u32 [#allocation2], 4
      %s105 = int_to_ptr.vmem [resolvable:$true] %s104
      %107 = dma.vmem_to_hbm [thread:$0]  %s105, 256, %s2, [#allocation3]
    $region13: #{tpu_custom_call.1} parent=1 // pred_fallthru
      _
    // Predicated region
    $region14: #{tpu_custom_call.1} parent=1 // pred_check
      _
    $region15: #{tpu_custom_call.1} parent=1 // pred_check_branch
      %109 = sbr.rel (0) target = $region17
    $region16: #{tpu_custom_call.1} parent=1 // pred_region
      %110 = dma.done [#allocation3], 256
    $region17: #{tpu_custom_call.1} parent=1 // pred_fallthru
      _
    %111 = vsyncpa [#allocation3], 1

</llo_original>
